<compile_context>
chip_gen: v7x
topology: tpu7x:2x2x1
jax: 0.10.0
libtpu: 0.0.40
codegen_flags: <defaults>
</compile_context>

<pallas_src>
import functools

import jax
import jax.numpy as jnp
from jax.experimental import pallas as pl
from jax.experimental.pallas import tpu as pltpu


# ---------------------------------------------------------------------------
# Interpolation weight matrices (tiny, computed in plain JAX).
# ---------------------------------------------------------------------------
def _resize_weight_matrix(in_size: int, out_size: int, mode: str, antialias: bool,
                          dtype) -> jax.Array:
    """Returns a (out_size, in_size) matrix W with resized = W @ signal."""
    scale = in_size / out_size
    if mode == "nearest":
        # torch / torchvision NEAREST: src = floor(dst * in/out)
        idx = jnp.floor(jnp.arange(out_size, dtype=jnp.float32) * scale).astype(jnp.int32)
        idx = jnp.clip(idx, 0, in_size - 1)
        return jax.nn.one_hot(idx, in_size, dtype=dtype)          # exact 0/1 rows
    # bilinear (triangle filter); PIL/torchvision-style antialias widens the
    # support by the downscale factor.
    support = max(scale, 1.0) if antialias else 1.0
    out_coords = (jnp.arange(out_size, dtype=jnp.float32) + 0.5) * scale - 0.5
    in_coords = jnp.arange(in_size, dtype=jnp.float32)
    dist = jnp.abs(in_coords[None, :] - out_coords[:, None]) / support
    w = jnp.clip(1.0 - dist, 0.0, None)                           # (out, in)
    w = w / jnp.sum(w, axis=1, keepdims=True)                     # renormalize at borders
    return w.astype(dtype)


# ---------------------------------------------------------------------------
# Pallas kernel: one channel plane per grid step, two MXU matmuls.
# ---------------------------------------------------------------------------
def _resize_kernel(wh_ref, wwt_ref, x_ref, o_ref, *, compute_dtype, rows_first):
    # wh_ref : (H_out, H_in)      row-interpolation weights
    # wwt_ref: (W_in, W_out)      column-interpolation weights (transposed)
    # x_ref  : (1, H_in, W_in)    one input channel plane (native dtype)
    # o_ref  : (1, H_out, W_out)  one output channel plane (float32)
    x = x_ref[0].astype(compute_dtype)            # in-kernel cast (no wrapper HBM copy)
    wh = wh_ref[...]
    wwt = wwt_ref[...]
    if rows_first:
        tmp = jnp.dot(wh, x, preferred_element_type=jnp.float32)        # (H_out, W_in)
        out = jnp.dot(tmp.astype(compute_dtype), wwt,
                      preferred_element_type=jnp.float32)                # (H_out, W_out)
    else:
        tmp = jnp.dot(x, wwt, preferred_element_type=jnp.float32)       # (H_in, W_out)
        out = jnp.dot(wh, tmp.astype(compute_dtype),
                      preferred_element_type=jnp.float32)                # (H_out, W_out)
    o_ref[0] = out.astype(o_ref.dtype)


def pallas_resize(x: jax.Array, size, mode: str = "bilinear", antialias: bool = True):
    """Resize a (C, H, W) or (H, W) array to `size=(H_out, W_out)`. Returns float32."""
    squeeze = (x.ndim == 2)
    if squeeze:
        x = x[None]
    assert x.ndim == 3, "expected (C, H, W) or (H, W) input"
    C, H_in, W_in = x.shape
    H_out, W_out = int(size[0]), int(size[1])

    # bf16 feeds the MXU natively for the smooth bilinear filter; nearest is an
    # exact 0/1 selection and stays in f32 so integer mask values are preserved.
    compute_dtype = jnp.bfloat16 if mode == "bilinear" else jnp.float32

    wh = _resize_weight_matrix(H_in, H_out, mode, antialias, compute_dtype)      # (H_out, H_in)
    wwt = _resize_weight_matrix(W_in, W_out, mode, antialias, compute_dtype).T   # (W_in, W_out)

    # Pick the cheaper contraction order from the static shapes.
    cost_rows_first = H_out * W_in * (H_in + W_out)
    cost_cols_first = H_in * W_out * (W_in + H_out)
    rows_first = cost_rows_first <= cost_cols_first

    kernel = functools.partial(_resize_kernel,
                               compute_dtype=compute_dtype,
                               rows_first=rows_first)

    # Explicit scoped-VMEM budget: 2x double-buffered in/out/weight blocks plus
    # the intermediate, with generous headroom; never below the 32 MiB default.
    w_itemsize = jnp.dtype(compute_dtype).itemsize
    in_block = H_in * W_in * jnp.dtype(x.dtype).itemsize
    out_block = H_out * W_out * 4
    w_bytes = (H_out * H_in + W_in * W_out) * w_itemsize
    tmp_bytes = (H_out * W_in if rows_first else H_in * W_out) * 4
    need = 2 * (in_block + out_block + w_bytes) + tmp_bytes
    vmem_limit = max(32 << 20, min(2 * need + (4 << 20), 64 << 20))

    out = pl.pallas_call(
        kernel,
        out_shape=jax.ShapeDtypeStruct((C, H_out, W_out), jnp.float32),
        grid_spec=pltpu.PrefetchScalarGridSpec(
            num_scalar_prefetch=0,
            grid=(C,),
            in_specs=[
                pl.BlockSpec((H_out, H_in), lambda c: (0, 0)),       # row weights (resident)
                pl.BlockSpec((W_in, W_out), lambda c: (0, 0)),       # col weights (resident)
                pl.BlockSpec((1, H_in, W_in), lambda c: (c, 0, 0)),  # each plane read once
            ],
            out_specs=pl.BlockSpec((1, H_out, W_out), lambda c: (c, 0, 0)),
        ),
        compiler_params=pltpu.CompilerParams(
            # Channels are independent -> megacore-shardable on v7x; harmless elsewhere.
            dimension_semantics=("parallel",),
            vmem_limit_bytes=int(vmem_limit),
        ),
    )(wh, wwt, x)

    if squeeze:
        out = out[0]
    return out


# ---------------------------------------------------------------------------
# Mirror of Resize.forward on the container (batched by shared weight matrices).
# ---------------------------------------------------------------------------
def resize_transform(container: dict, size) -> dict:
    # TODO(synk): integer `size` (shorter-edge) semantics and torchvision's
    #             uint8 rounding / dtype preservation are not implemented;
    #             outputs are float32.
    plan = [
        ("img",           "bilinear", True),
        ("semantic_mask", "nearest",  False),
        # TODO(synk): torchvision's implicit antialias default here is
        # version-dependent; modern torchvision uses antialias=True for bilinear.
        ("embedding",     "bilinear", True),
        ("mask",          "nearest",  False),
        ("border",        "nearest",  False),
    ]

    # Group present entries that share interpolation weights (and are
    # concatenable) into one pallas_call each: 5 launches -> 2 in the common case.
    groups = {}
    for name, mode, aa in plan:
        if name not in container:
            continue
        arr = container[name]
        squeeze = (arr.ndim == 2)
        arr3 = arr[None] if squeeze else arr
        key = (mode, aa, str(arr3.dtype), arr3.shape[1:])
        groups.setdefault(key, []).append((name, squeeze, arr3))

    out = dict(container)
    for (mode, aa, _dt, _hw), items in groups.items():
        if len(items) == 1:
            name, squeeze, arr3 = items[0]
            res = pallas_resize(arr3, size, mode=mode, antialias=aa)
            out[name] = res[0] if squeeze else res
            continue
        x = jnp.concatenate([a for _, _, a in items], axis=0)
        y = pallas_resize(x, size, mode=mode, antialias=aa)
        off = 0
        for name, squeeze, a in items:
            c = a.shape[0]
            res = y[off:off + c]
            out[name] = res[0] if squeeze else res
            off += c
    return out


# ---------------------------------------------------------------------------
# Demo / self-check.
# ---------------------------------------------------------------------------
def _ref_resize(x, size, mode, antialias):
    """Plain-JAX full-precision reference using the same weight matrices."""
    squeeze = (x.ndim == 2)
    if squeeze:
        x = x[None]
    H_in, W_in = x.shape[-2:]
    H_out, W_out = size
    wh = _resize_weight_matrix(H_in, H_out, mode, antialias, jnp.float32)
    wwt = _resize_weight_matrix(W_in, W_out, mode, antialias, jnp.float32).T
    out = jnp.einsum('oh,chw,wn->con', wh, x.astype(jnp.float32), wwt,
                     precision=jax.lax.Precision.HIGHEST)
    return out[0] if squeeze else out


if __name__ == "__main__":
    key = jax.random.PRNGKey(0)
    k1, k2, k3, k4, k5 = jax.random.split(key, 5)
    H_in, W_in = 16, 16
    size = (8, 12)   # downscale -> exercises the antialias path

    container = {
        "img":           jax.random.uniform(k1, (3, H_in, W_in), jnp.float32),
        "semantic_mask": jax.random.randint(k2, (1, H_in, W_in), 0, 21).astype(jnp.float32),
        "embedding":     jax.random.uniform(k3, (4, H_in, W_in), jnp.float32),
        "mask":          jax.random.randint(k4, (1, H_in, W_in), 0, 2).astype(jnp.float32),
        "border":        jax.random.randint(k5, (1, H_in, W_in), 0, 2).astype(jnp.float32),
    }

    out = resize_transform(dict(container), size)
    for v in out.values():
        jax.block_until_ready(v)

    specs = {
        "img": ("bilinear", True),
        "semantic_mask": ("nearest", False),
        "embedding": ("bilinear", True),
        "mask": ("nearest", False),
        "border": ("nearest", False),
    }
    for name, (mode, aa) in specs.items():
        ref = _ref_resize(container[name], size, mode, aa)
        got = out[name]
        assert got.shape == ref.shape, (name, got.shape, ref.shape)
        assert got.dtype == jnp.float32, (name, got.dtype)
        # NEAREST is an exact 0/1 selection of small-integer values; bilinear
        # tolerates bf16 MXU rounding.
        tol = 1e-5 if mode == "nearest" else 3e-2
        err = float(jnp.max(jnp.abs(got - ref)))
        assert err <= tol, (name, err)

    print("KERNEL_OK")
</pallas_src>

<mosaic_0001>
module attributes {stable_mosaic.version = 11 : i64} {
  func.func @_resize_kernel(%arg0: i32, %arg1: memref<8x16xbf16, #tpu.memory_space<vmem>>, %arg2: memref<16x12xbf16, #tpu.memory_space<vmem>>, %arg3: memref<1x16x16xf32, #tpu.memory_space<vmem>>, %arg4: memref<1x8x12xf32, #tpu.memory_space<vmem>>) attributes {dimension_semantics = [#tpu.dimension_semantics<parallel>], iteration_bounds = array<i64: 7>, scalar_prefetch = 0 : i64, scratch_operands = 0 : i64, tpu.core_type = #tpu.core_type<tc>, window_params = [{pipeline_mode = #tpu.pipeline_mode<synchronous>, transform_indices = @transform_0, window_bounds = array<i64: 8, 16>}, {pipeline_mode = #tpu.pipeline_mode<synchronous>, transform_indices = @transform_1, window_bounds = array<i64: 16, 12>}, {transform_indices = @transform_2, window_bounds = array<i64: 1, 16, 16>}, {transform_indices = @transform_3, window_bounds = array<i64: 1, 8, 12>}]} {
    %c0 = arith.constant 0 : index
    %c0_0 = arith.constant 0 : index
    %c0_1 = arith.constant 0 : index
    %0 = vector.load %arg3[%c0, %c0_0, %c0_1] : memref<1x16x16xf32, #tpu.memory_space<vmem>>, vector<1x16x16xf32>
    %1 = vector.shape_cast %0 : vector<1x16x16xf32> to vector<16x16xf32>
    %2 = arith.truncf %1 : vector<16x16xf32> to vector<16x16xbf16>
    %c0_2 = arith.constant 0 : index
    %c0_3 = arith.constant 0 : index
    %3 = vector.load %arg1[%c0_2, %c0_3] : memref<8x16xbf16, #tpu.memory_space<vmem>>, vector<8x16xbf16>
    %c0_4 = arith.constant 0 : index
    %c0_5 = arith.constant 0 : index
    %4 = vector.load %arg2[%c0_4, %c0_5] : memref<16x12xbf16, #tpu.memory_space<vmem>>, vector<16x12xbf16>
    %cst = arith.constant dense<0.000000e+00> : vector<8x16xf32>
    %5 = tpu.matmul %3, %2, %cst {dimension_numbers = #tpu.dot_dimension_numbers<[1], [0], [0], [1], [0, 0, 1, 1], [], []>} : vector<8x16xbf16>, vector<16x16xbf16>, vector<8x16xf32> -> vector<8x16xf32>
    %6 = arith.truncf %5 : vector<8x16xf32> to vector<8x16xbf16>
    %cst_6 = arith.constant dense<0.000000e+00> : vector<8x12xf32>
    %7 = tpu.matmul %6, %4, %cst_6 {dimension_numbers = #tpu.dot_dimension_numbers<[1], [0], [0], [1], [0, 0, 1, 1], [], []>} : vector<8x16xbf16>, vector<16x12xbf16>, vector<8x12xf32> -> vector<8x12xf32>
    %c0_7 = arith.constant 0 : index
    %c0_8 = arith.constant 0 : index
    %c0_9 = arith.constant 0 : index
    %8 = vector.load %arg4[%c0_7, %c0_8, %c0_9] : memref<1x8x12xf32, #tpu.memory_space<vmem>>, vector<1x8x12xf32>
    %9 = vector.shape_cast %8 : vector<1x8x12xf32> to vector<8x12xf32>
    %10 = vector.shape_cast %7 : vector<8x12xf32> to vector<1x8x12xf32>
    tpu.vector_store %arg4[%c0_7, %c0_8, %c0_9], %10 {strides = array<i32>} : memref<1x8x12xf32, #tpu.memory_space<vmem>>, vector<1x8x12xf32>,
    return
  }
  func.func @transform_0(%arg0: i32) -> (i32, i32) {
    %c0_i32 = arith.constant 0 : i32
    %c0_i32_0 = arith.constant 0 : i32
    %c0_i32_1 = arith.constant 0 : i32
    return %c0_i32, %c0_i32_0 : i32, i32
  }
  func.func @transform_1(%arg0: i32) -> (i32, i32) {
    %c0_i32 = arith.constant 0 : i32
    %c0_i32_0 = arith.constant 0 : i32
    %c0_i32_1 = arith.constant 0 : i32
    return %c0_i32, %c0_i32_0 : i32, i32
  }
  func.func @transform_2(%arg0: i32) -> (i32, i32, i32) {
    %c0_i32 = arith.constant 0 : i32
    %c0_i32_0 = arith.constant 0 : i32
    %c0_i32_1 = arith.constant 0 : i32
    return %arg0, %c0_i32, %c0_i32_0 : i32, i32, i32
  }
  func.func @transform_3(%arg0: i32) -> (i32, i32, i32) {
    %c0_i32 = arith.constant 0 : i32
    %c0_i32_0 = arith.constant 0 : i32
    %c0_i32_1 = arith.constant 0 : i32
    return %arg0, %c0_i32, %c0_i32_0 : i32, i32, i32
  }
}

</mosaic_0001>

<llo_original>
// kernel: tpu_custom_call.1
$region0: #{tpu_custom_call.1}
  #allocation0 [shape = 'u32[]', space=smem, size = 0x4, offset = 0x4, fixed_abs, tag = 'smem constant byte address 0x4 - core index']
  #allocation1 [shape = 'u32[144,128]{1,0:T(1,128)}', space=vmem, size = 0x12000, scoped, tag = 'internal scratch']
  %s0 = inlined_call_operand.hbm [shape: bf16[8,16], index: 0, kind: input, shape index: {}]
  %s1 = inlined_call_operand.hbm [shape: bf16[16,12], index: 1, kind: input, shape index: {}]
  %s2 = inlined_call_operand.hbm [shape: f32[7,16,16], index: 2, kind: input, shape index: {}]
  %s3 = inlined_call_operand.hbm [shape: f32[7,8,12], index: 3, kind: output, shape index: {}]
  %s4 = sld [smem:[#allocation0]]
  $region57: #{tpu_custom_call.1} parent=0
    _
  %s6 = ssub.s32 1, %s4
  %s7 = scalar_select 0, %s6, %s4
  $region1: #{tpu_custom_call.1} parent=0
    #allocation2 [shape = 'u8[2048]{0}', space=vmem, size = 0x800, scoped, tag = 'input window, operand 0, single buffered']
    #allocation3 [shape = 's32[2]{0}', space=sflag, size = 0x8, scoped, tag = 'scoped memory for tpu_custom_call.1']
    #allocation4 [shape = 's32[2]{0}', space=sflag, size = 0x8, scoped, tag = 'scoped memory for tpu_custom_call.1']
    #allocation5 [shape = 'u8[4096]{0}', space=vmem, size = 0x1000, scoped, tag = 'input window, operand 1, single buffered']
    #allocation6 [shape = 's32[1]{0}', space=sflag, size = 0x4, scoped, tag = 'scoped memory for tpu_custom_call.1']
    #allocation7 [shape = 'u8[16384]{0}', space=vmem, size = 0x4000, scoped, tag = 'input window, operand 2']
    #allocation8 [shape = 'u8[8192]{0}', space=vmem, size = 0x2000, scoped, tag = 'output window, operand 0']
    %8 = vsyncpa [#allocation3], 0
    %9 = vsyncpa [#allocation6], 0
    %10 = vsyncpa [#allocation4], 0
    %s11 = scalar_lea.sflag [#allocation4], 1
    %12 = vsyncpa %s11, 0
    loop: start=0, step=1, limit=9
    $region2: #{tpu_custom_call.1} parent=1 // loop_pre_header
      _
    $region3: #{tpu_custom_call.1} parent=1 // loop_header
      %s14 = sphi 0, %s18
      %p15 = scmp.ge.s32.totalorder %s14, 9
      %s22 = sphi 0, %s22
      %s24 = sphi 0, %s22
      %s25 = sphi 0, %s24
      %s39 = sphi 0, %s25
      %s43 = sphi 0, %s43
      %s45 = sphi 0, %s43
      %s46 = sphi 0, %s45
      %s60 = sphi 0, %s46
      %s66 = sphi 0, %s68
      %s69 = sphi 0, %s66
      %s70 = sphi 0, %s69
      %s86 = sphi 0, %s70
      %s92 = sphi 0, %s94
      %s95 = sphi 0, %s92
      %s96 = sphi 0, %s95
      %s112 = sphi 0, %s96
    $region4: #{tpu_custom_call.1} parent=1 // loop_header_branch
      %17 = sbr.rel (%p15) target = $region8
    $region5: #{tpu_custom_call.1} parent=1 // loop_body
      %s19 = ssub.s32 %s14, 1
      %s20 = ssub.s32 %s14, 2
      %s21 = sadd.s32 %s14, 1
      %s23 = sadd.s32 %s22, 1
      %p26 = scmp.eq.s32.totalorder %s14, 6
      %p27 = scmp.ne.s32.totalorder %s22, %s24
      %p28 = scmp.eq.s32.totalorder %s14, 0
      %p29 = por %p27, %p28
      %p30 = scmp.ne.s32.totalorder %s22, %s24
      %p31 = scmp.eq.s32.totalorder %s19, 6
      %p32 = por %p30, %p31
      %p33 = scmp.ne.s32.totalorder %s24, %s25
      %p34 = scmp.eq.s32.totalorder %s19, 0
      %p35 = por %p33, %p34
      %p36 = scmp.ne.s32.totalorder %s24, %s25
      %p37 = scmp.eq.s32.totalorder %s20, 6
      %p38 = por %p36, %p37
      %p40 = scmp.ne.s32.totalorder %s25, %s39
      %p41 = scmp.eq.s32.totalorder %s20, 0
      %p42 = por %p40, %p41
      %s44 = sadd.s32 %s43, 1
      %p47 = scmp.eq.s32.totalorder %s14, 6
      %p48 = scmp.ne.s32.totalorder %s43, %s45
      %p49 = scmp.eq.s32.totalorder %s14, 0
      %p50 = por %p48, %p49
      %p51 = scmp.ne.s32.totalorder %s43, %s45
      %p52 = scmp.eq.s32.totalorder %s19, 6
      %p53 = por %p51, %p52
      %p54 = scmp.ne.s32.totalorder %s45, %s46
      %p55 = scmp.eq.s32.totalorder %s19, 0
      %p56 = por %p54, %p55
      %p57 = scmp.ne.s32.totalorder %s45, %s46
      %p58 = scmp.eq.s32.totalorder %s20, 6
      %p59 = por %p57, %p58
      %p61 = scmp.ne.s32.totalorder %s46, %s60
      %p62 = scmp.eq.s32.totalorder %s20, 0
      %p63 = por %p61, %p62
      %s64 = ssub.s32 %s14, %s21
      %p65 = scmp.eq.s32.totalorder %s64, 0
      %s67 = sadd.s32 %s66, 1
      %s68 = scalar_select %p65, %s66, %s67
      %p71 = pneg %p65
      %p72 = scmp.eq.s32.totalorder %s14, 6
      %p73 = por %p71, %p72
      %p74 = scmp.ne.s32.totalorder %s66, %s69
      %p75 = scmp.eq.s32.totalorder %s14, 0
      %p76 = por %p74, %p75
      %p77 = scmp.ne.s32.totalorder %s66, %s69
      %p78 = scmp.eq.s32.totalorder %s19, 6
      %p79 = por %p77, %p78
      %p80 = scmp.ne.s32.totalorder %s69, %s70
      %p81 = scmp.eq.s32.totalorder %s19, 0
      %p82 = por %p80, %p81
      %p83 = scmp.ne.s32.totalorder %s69, %s70
      %p84 = scmp.eq.s32.totalorder %s20, 6
      %p85 = por %p83, %p84
      %p87 = scmp.ne.s32.totalorder %s70, %s86
      %p88 = scmp.eq.s32.totalorder %s20, 0
      %p89 = por %p87, %p88
      %s90 = ssub.s32 %s14, %s21
      %p91 = scmp.eq.s32.totalorder %s90, 0
      %s93 = sadd.s32 %s92, 1
      %s94 = scalar_select %p91, %s92, %s93
      %p97 = pneg %p91
      %p98 = scmp.eq.s32.totalorder %s14, 6
      %p99 = por %p97, %p98
      %p100 = scmp.ne.s32.totalorder %s92, %s95
      %p101 = scmp.eq.s32.totalorder %s14, 0
      %p102 = por %p100, %p101
      %p103 = scmp.ne.s32.totalorder %s92, %s95
      %p104 = scmp.eq.s32.totalorder %s19, 6
      %p105 = por %p103, %p104
      %p106 = scmp.ne.s32.totalorder %s95, %s96
      %p107 = scmp.eq.s32.totalorder %s19, 0
      %p108 = por %p106, %p107
      %p109 = scmp.ne.s32.totalorder %s95, %s96
      %p110 = scmp.eq.s32.totalorder %s20, 6
      %p111 = por %p109, %p110
      %p113 = scmp.ne.s32.totalorder %s96, %s112
      %p114 = scmp.eq.s32.totalorder %s20, 0
      %p115 = por %p113, %p114
      %p116 = scmp.le.s32.totalorder 1, %s14
      %p117 = scmp.lt.s32.totalorder %s14, 8
      %p118 = pnand %p116, %p117
      %p119 = pneg %p118
      // Predicated region
      $region9: #{tpu_custom_call.1} parent=5 // pred_check
        _
      $region10: #{tpu_custom_call.1} parent=5 // pred_check_branch
        %121 = sbr.rel (%p118) target = $region12
      $region11: #{tpu_custom_call.1} parent=5 // pred_region
        %s122 = ssub.s32 %s14, 1
        // Predicated region
        $region13: #{tpu_custom_call.1} parent=11 // pred_check
          %p123 = pneg %p35
        $region14: #{tpu_custom_call.1} parent=11 // pred_check_branch
          %125 = sbr.rel (%p123) target = $region16
        $region15: #{tpu_custom_call.1} parent=11 // pred_region
          %s127 = ssub.s32 64, 64
          %128 = vsyncadd [#allocation3], %s127
          %s130 = sshll.u32 [#allocation2], 4
          %s131 = int_to_ptr.vmem [resolvable:$true] %s130
          %133 = dma.hbm_to_vmem [thread:$0]  %s0, 64, %s131, [#allocation3]
        $region16: #{tpu_custom_call.1} parent=11 // pred_fallthru
          _
        // Predicated region
        $region17: #{tpu_custom_call.1} parent=11 // pred_check
          %p134 = pneg %p56
        $region18: #{tpu_custom_call.1} parent=11 // pred_check_branch
          %136 = sbr.rel (%p134) target = $region20
        $region19: #{tpu_custom_call.1} parent=11 // pred_region
          %s138 = ssub.s32 128, 128
          %139 = vsyncadd [#allocation6], %s138
          %s140 = sshll.u32 [#allocation5], 4
          %s141 = int_to_ptr.vmem [resolvable:$true] %s140
          %146 = dma.hbm_to_vmem [thread:$0]  %s1, 128, %s141, [#allocation6], 64, 64, 4
        $region20: #{tpu_custom_call.1} parent=11 // pred_fallthru
          _
      $region12: #{tpu_custom_call.1} parent=5 // pred_fallthru
        _
      %p147 = scmp.lt.s32.totalorder %s14, 7
      // Predicated region
      $region21: #{tpu_custom_call.1} parent=5 // pred_check
        %p148 = pneg %p147
      $region22: #{tpu_custom_call.1} parent=5 // pred_check_branch
        %150 = sbr.rel (%p148) target = $region24
      $region23: #{tpu_custom_call.1} parent=5 // pred_region
        // Predicated region
        $region25: #{tpu_custom_call.1} parent=23 // pred_check
          %p151 = pneg %p76
        $region26: #{tpu_custom_call.1} parent=23 // pred_check_branch
          %153 = sbr.rel (%p151) target = $region28
        $region27: #{tpu_custom_call.1} parent=23 // pred_region
          %s154 = sand.u32 %s14, 1
          %s155 = scalar_lea.sflag [#allocation3], %s154
          %s156 = sand.u32 %s66, 1
          %s157 = smul.addr %s156, 16
          %s158 = scalar_lea.vmem [#allocation7], %s157
          %s160 = ssub.s32 256, 256
          %161 = vsyncadd %s155, %s160
          %s162 = smul.addr %s14, 2
          %s163 = smul.addr %s162, 128
          %s164 = scalar_lea.hbm %s2, %s163
          %s165 = sshll.u32 %s158, 4
          %s166 = int_to_ptr.vmem [resolvable:$true] %s165
          %171 = dma.hbm_to_vmem [thread:$0]  %s164, 256, %s166, %s155, 128, 128, 8
        $region28: #{tpu_custom_call.1} parent=23 // pred_fallthru
          _
      $region24: #{tpu_custom_call.1} parent=5 // pred_fallthru
        _
      %p172 = scmp.le.s32.totalorder 1, %s14
      %p173 = scmp.lt.s32.totalorder %s14, 8
      %p174 = pnand %p172, %p173
      %p175 = pneg %p174
      // Predicated region
      $region29: #{tpu_custom_call.1} parent=5 // pred_check
        _
      $region30: #{tpu_custom_call.1} parent=5 // pred_check_branch
        %177 = sbr.rel (%p174) target = $region32
      $region31: #{tpu_custom_call.1} parent=5 // pred_region
        %s178 = ssub.s32 %s14, 1
        // Predicated region
        $region33: #{tpu_custom_call.1} parent=31 // pred_check
          %p179 = pneg %p35
        $region34: #{tpu_custom_call.1} parent=31 // pred_check_branch
          %181 = sbr.rel (%p179) target = $region36
        $region35: #{tpu_custom_call.1} parent=31 // pred_region
          %182 = dma.done [#allocation3], 64
        $region36: #{tpu_custom_call.1} parent=31 // pred_fallthru
          _
        // Predicated region
        $region37: #{tpu_custom_call.1} parent=31 // pred_check
          %p183 = pneg %p56
        $region38: #{tpu_custom_call.1} parent=31 // pred_check_branch
          %185 = sbr.rel (%p183) target = $region40
        $region39: #{tpu_custom_call.1} parent=31 // pred_region
          %186 = dma.done [#allocation6], 128
        $region40: #{tpu_custom_call.1} parent=31 // pred_fallthru
          _
        %s187 = sand.u32 %s19, 1
        %s188 = scalar_lea.sflag [#allocation3], %s187
        %s189 = sand.u32 %s69, 1
        %s190 = smul.addr %s189, 16
        %s191 = scalar_lea.vmem [#allocation7], %s190
        // Predicated region
        $region41: #{tpu_custom_call.1} parent=31 // pred_check
          %p192 = pneg %p82
        $region42: #{tpu_custom_call.1} parent=31 // pred_check_branch
          %194 = sbr.rel (%p192) target = $region44
        $region43: #{tpu_custom_call.1} parent=31 // pred_region
          %195 = dma.done %s188, 256
        $region44: #{tpu_custom_call.1} parent=31 // pred_fallthru
          _
        %p196 = pneg %p35
        %p197 = pneg %p32
        %p198 = pneg %p56
        %p199 = pneg %p53
        %s200 = sand.u32 %s19, 1
        %s201 = scalar_lea.sflag [#allocation3], %s200
        %s202 = sand.u32 %s69, 1
        %s203 = smul.addr %s202, 16
        %s204 = scalar_lea.vmem [#allocation7], %s203
        %p205 = pneg %p82
        %p206 = pneg %p79
        %p207 = pneg %p108
        %p208 = pneg %p105
        %s209 = sand.u32 %s95, 1
        %s210 = scalar_lea.sflag [#allocation4], %s209
        %s211 = sand.u32 %s95, 1
        %s212 = smul.addr %s211, 8
        %s213 = scalar_lea.vmem [#allocation8], %s212
        %v215 = vld [vmem:[%s191] sm:$0xff]
        %v216 = vld [vmem:[%s191 + $0x8] sm:$0xff]
        %v217 = vpack.c.bf16 %v216, %v215
        %v218 = vld [vmem:[#allocation2] sm:$0xf]
        %v219 = vld [vmem:[#allocation5] sm:$0xf]
        %v220 = vld [vmem:[#allocation5 + $0x4] sm:$0xf]
        %vm221 = vcmask 130048
        %v223 = vsel %vm221, %v218, 0
        %225 = vmatprep.subr.bf16.mxu0 0
        %226 = vmatpush1.bf16.msra.mxu0 %v217
        %227 = vmatprep.subr.bf16.mxu0 0
        %228 = vmatpush1.bf16.msra.mxu0 0
        %229 = vmatprep.subr.bf16.mxu0 0
        %230 = vmatpush1.bf16.msra.mxu0 0
        %231 = vmatprep.subr.bf16.mxu0 0
        %232 = vmatpush1.bf16.msra.mxu0 0
        %233 = vmatprep.subr.bf16.mxu0 0
        %234 = vmatpush1.bf16.msra.mxu0 0
        %235 = vmatprep.subr.bf16.mxu0 0
        %236 = vmatpush1.bf16.msra.mxu0 0
        %237 = vmatprep.subr.bf16.mxu0 0
        %238 = vmatpush1.bf16.msra.mxu0 0
        %239 = vmatprep.subr.bf16.mxu0 0
        %240 = vmatpush1.bf16.msra.mxu0 0
        %241 = vmatprep.subr.bf16.mxu0 0
        %242 = vmatpush1.bf16.msra.mxu0 0
        %243 = vmatprep.subr.bf16.mxu0 0
        %244 = vmatpush1.bf16.msra.mxu0 0
        %245 = vmatprep.subr.bf16.mxu0 0
        %246 = vmatpush1.bf16.msra.mxu0 0
        %247 = vmatprep.subr.bf16.mxu0 0
        %248 = vmatpush1.bf16.msra.mxu0 0
        %249 = vmatprep.subr.bf16.mxu0 0
        %250 = vmatpush1.bf16.msra.mxu0 0
        %251 = vmatprep.subr.bf16.mxu0 0
        %252 = vmatpush1.bf16.msra.mxu0 0
        %253 = vmatprep.subr.bf16.mxu0 0
        %254 = vmatpush1.bf16.msra.mxu0 0
        %255 = vmatprep.subr.bf16.mxu0 0
        %256 = vmatpush1.bf16.msra.mxu0 0
        %257 = vmatprep.mubr.bf16.mxu0 0
        %258 = vmatmul.mubr.bf16.gmra.mrb[0].mxu0 %v223
        %v259 = vpop.f32.mrb[0].mxu0
        %v260 = vadd.f32 0.0, %v259
        %v261 = vpop.f32.mrb[0].mxu0
        %v262 = vpop.f32.mrb[0].mxu0
        %v263 = vpop.f32.mrb[0].mxu0
        %264 = vdwg.mxu0
        %v265 = vpack.c.bf16 %v260, %v260
        %v268 = vunpack.c.l.b16 %v219
        %v269 = vunpack.c.l.b16 %v220
        %v270 = vpack.c.b16 %v269, %v268
        %v273 = vsel %vm221, %v265, 0
        %275 = vmatprep.subr.bf16.mxu0 0
        %276 = vmatpush1.bf16.msra.mxu0 %v270
        %277 = vmatprep.subr.bf16.mxu0 0
        %278 = vmatpush1.bf16.msra.mxu0 0
        %279 = vmatprep.subr.bf16.mxu0 0
        %280 = vmatpush1.bf16.msra.mxu0 0
        %281 = vmatprep.subr.bf16.mxu0 0
        %282 = vmatpush1.bf16.msra.mxu0 0
        %283 = vmatprep.subr.bf16.mxu0 0
        %284 = vmatpush1.bf16.msra.mxu0 0
        %285 = vmatprep.subr.bf16.mxu0 0
        %286 = vmatpush1.bf16.msra.mxu0 0
        %287 = vmatprep.subr.bf16.mxu0 0
        %288 = vmatpush1.bf16.msra.mxu0 0
        %289 = vmatprep.subr.bf16.mxu0 0
        %290 = vmatpush1.bf16.msra.mxu0 0
        %291 = vmatprep.subr.bf16.mxu0 0
        %292 = vmatpush1.bf16.msra.mxu0 0
        %293 = vmatprep.subr.bf16.mxu0 0
        %294 = vmatpush1.bf16.msra.mxu0 0
        %295 = vmatprep.subr.bf16.mxu0 0
        %296 = vmatpush1.bf16.msra.mxu0 0
        %297 = vmatprep.subr.bf16.mxu0 0
        %298 = vmatpush1.bf16.msra.mxu0 0
        %299 = vmatprep.subr.bf16.mxu0 0
        %300 = vmatpush1.bf16.msra.mxu0 0
        %301 = vmatprep.subr.bf16.mxu0 0
        %302 = vmatpush1.bf16.msra.mxu0 0
        %303 = vmatprep.subr.bf16.mxu0 0
        %304 = vmatpush1.bf16.msra.mxu0 0
        %305 = vmatprep.subr.bf16.mxu0 0
        %306 = vmatpush1.bf16.msra.mxu0 0
        %307 = vmatprep.mubr.bf16.mxu0 0
        %308 = vmatmul.mubr.bf16.gmra.mrb[0].mxu0 %v273
        %v309 = vpop.f32.mrb[0].mxu0
        %v310 = vadd.f32 0.0, %v309
        %v311 = vpop.f32.mrb[0].mxu0
        %v312 = vpop.f32.mrb[0].mxu0
        %v313 = vpop.f32.mrb[0].mxu0
        %314 = vdwg.mxu0
        %vm315 = vcmask 97280
        %316 = vst.msk [vmem:[%s213] sm:$0xff] %vm315, %v310
        %s317 = sand.u32 %s95, 1
        %s318 = scalar_lea.sflag [#allocation4], %s317
        %s319 = sand.u32 %s95, 1
        %s320 = smul.addr %s319, 8
        %s321 = scalar_lea.vmem [#allocation8], %s320
        // Predicated region
        $region45: #{tpu_custom_call.1} parent=31 // pred_check
          %p322 = pneg %p105
        $region46: #{tpu_custom_call.1} parent=31 // pred_check_branch
          %324 = sbr.rel (%p322) target = $region48
        $region47: #{tpu_custom_call.1} parent=31 // pred_region
          %s326 = ssub.s32 128, 128
          %327 = vsyncadd %s318, %s326
          %s328 = smul.addr %s19, 128
          %s329 = scalar_lea.hbm %s3, %s328
          %s331 = sshll.u32 %s321, 4
          %s332 = int_to_ptr.vmem [resolvable:$true] %s331
          %334 = dma.vmem_to_hbm [thread:$0]  %s332, 128, %s329, %s318
        $region48: #{tpu_custom_call.1} parent=31 // pred_fallthru
          _
      $region32: #{tpu_custom_call.1} parent=5 // pred_fallthru
        _
      %p335 = scmp.le.s32.totalorder 2, %s14
      // Predicated region
      $region49: #{tpu_custom_call.1} parent=5 // pred_check
        %p336 = pneg %p335
      $region50: #{tpu_custom_call.1} parent=5 // pred_check_branch
        %338 = sbr.rel (%p336) target = $region52
      $region51: #{tpu_custom_call.1} parent=5 // pred_region
        %s339 = ssub.s32 %s14, 2
        // Predicated region
        $region53: #{tpu_custom_call.1} parent=51 // pred_check
          %p340 = pneg %p111
        $region54: #{tpu_custom_call.1} parent=51 // pred_check_branch
          %342 = sbr.rel (%p340) target = $region56
        $region55: #{tpu_custom_call.1} parent=51 // pred_region
          %s343 = sand.u32 %s96, 1
          %s344 = scalar_lea.sflag [#allocation4], %s343
          %s345 = sand.u32 %s96, 1
          %s346 = smul.addr %s345, 8
          %s347 = scalar_lea.vmem [#allocation8], %s346
          %348 = dma.done %s344, 128
        $region56: #{tpu_custom_call.1} parent=51 // pred_fallthru
          _
      $region52: #{tpu_custom_call.1} parent=5 // pred_fallthru
        _
    $region6: #{tpu_custom_call.1} parent=1 // loop_footer
      %s18 = sadd.s32 1, %s14
    $region7: #{tpu_custom_call.1} parent=1 // loop_footer_branch
      %13 = sbr.rel target = $region3
    $region8: #{tpu_custom_call.1} parent=1 // loop_exit
      _
    %349 = vsyncpa [#allocation3], 1
    %s350 = scalar_lea.sflag [#allocation3], 1
    %351 = vsyncpa %s350, 1
    %352 = vsyncpa [#allocation6], 1
    %353 = vsyncpa [#allocation4], 1
    %s354 = scalar_lea.sflag [#allocation4], 1
    %355 = vsyncpa %s354, 1

</llo_original>
